<compile_context>
chip_gen: v6e
topology: v6e:2x2x1
jax: 0.10.0
libtpu: 0.0.40
codegen_flags: <defaults>
</compile_context>

<pallas_src>
import math

import jax
import jax.numpy as jnp
from jax import lax
from jax.experimental import pallas as pl
from jax.experimental.pallas import tpu as pltpu

# ---- model config (small, BERT-style hidden/head layout) ----
B = 2               # batch
S = 8               # sequence length
H = 32              # hidden size
NUM_HEADS = 4
HEAD_DIM = H // NUM_HEADS
LN_EPS = 1e-12
BS = B * S          # merged (batch*seq) row count
QKV_PAD = 128       # fused QKV output lanes (Q|K|V|zero-pad) -> one full vreg width
OUT_PAD = 128       # lane-dense output width (kernel writes (BS,128), wrapper slices)


def bert_attention_kernel(x_ref, keymask_ref, blockmask_ref, wqkv_ref, bqkv_ref,
                          wo_ref, bo_ref, gamma_ref, beta_ref, out_ref):
    """Fused: QKV projection -> masked per-head attention -> output dense
    -> residual add -> LayerNorm, for the whole merged batch at once."""
    x = x_ref[...]                                            # (BS, H) f32

    # Additive attention mask over merged (batch*seq) rows/cols:
    # -1e9 on every cross-batch pair + per-key BERT mask (0 / -10000).
    mask = blockmask_ref[...] + keymask_ref[...]              # (BS, BS) f32

    # --- fused QKV projection: one (BS,H)@(H,128) bf16 matmul, f32 accum ---
    # Columns: [Q (pre-scaled by 1/sqrt(D)) | K | V | zero pad].
    qkv = jnp.dot(x.astype(jnp.bfloat16), wqkv_ref[...],
                  preferred_element_type=jnp.float32) + bqkv_ref[...]   # (BS, 128)

    # Three aligned 32-lane slabs, cast to bf16 once each.
    q = qkv[:, 0:H].astype(jnp.bfloat16)                      # (BS, H)
    k = qkv[:, H:2 * H].astype(jnp.bfloat16)                  # (BS, H)
    v = qkv[:, 2 * H:3 * H].astype(jnp.bfloat16)              # (BS, H)

    # --- per-head attention; heads statically unrolled (4 tiny MXU chains) ---
    ctx_heads = []
    for h in range(NUM_HEADS):
        lo = h * HEAD_DIM
        qh = q[:, lo:lo + HEAD_DIM]                           # (BS, D) bf16
        kh = k[:, lo:lo + HEAD_DIM]
        vh = v[:, lo:lo + HEAD_DIM]

        # q @ k^T without materializing a transpose (NT contraction).
        s = lax.dot_general(qh, kh, (((1,), (1,)), ((), ())),
                            preferred_element_type=jnp.float32) + mask  # (BS, BS)

        m = jnp.max(s, axis=-1, keepdims=True)
        e = jnp.exp(s - m)
        p = e * pl.reciprocal(jnp.sum(e, axis=-1, keepdims=True), approx=True)
        # attention-prob dropout is identity in eval mode

        ctx_heads.append(jnp.dot(p.astype(jnp.bfloat16), vh,
                                 preferred_element_type=jnp.float32))   # (BS, D)

    # --- single output projection: concat(ctx_h) @ Wo (one MXU push) ---
    ctx = jnp.concatenate(ctx_heads, axis=-1).astype(jnp.bfloat16)      # (BS, H)
    proj = jnp.dot(ctx, wo_ref[...], preferred_element_type=jnp.float32)

    # --- BertSelfOutput: bias -> (dropout=id) -> residual -> LayerNorm (f32) ---
    y = proj + bo_ref[...] + x
    mu = jnp.mean(y, axis=-1, keepdims=True)
    var = jnp.mean(jnp.square(y - mu), axis=-1, keepdims=True)
    yn = (y - mu) * lax.rsqrt(var + LN_EPS)
    res = gamma_ref[...] * yn + beta_ref[...]                           # (BS, H)

    # Lane-dense store: one full (BS,128) slab (valid data in lanes [0, H)).
    out_ref[...] = jnp.concatenate(
        [res, jnp.zeros((BS, OUT_PAD - H), jnp.float32)], axis=-1
    ).astype(out_ref.dtype)


def _full_spec(shape):
    return pl.BlockSpec(shape, lambda i: (0,) * len(shape))


# Built once at import; pure callable (no tracing until first call).
_fused_call = pl.pallas_call(
    bert_attention_kernel,
    out_shape=jax.ShapeDtypeStruct((BS, OUT_PAD), jnp.float32),
    grid_spec=pltpu.PrefetchScalarGridSpec(
        num_scalar_prefetch=0,
        grid=(1,),
        in_specs=[
            _full_spec((BS, H)),          # x (merged batch)           f32
            _full_spec((1, BS)),          # per-key BERT mask row      f32
            _full_spec((BS, BS)),         # cross-batch block mask     f32 (const)
            _full_spec((H, QKV_PAD)),     # fused, padded QKV weight   bf16
            _full_spec((1, QKV_PAD)),     # fused, padded QKV bias     f32
            _full_spec((H, H)),           # Wo                         bf16
            _full_spec((1, H)),           # bo
            _full_spec((1, H)),           # gamma
            _full_spec((1, H)),           # beta
        ],
        out_specs=_full_spec((BS, OUT_PAD)),
    ),
    # Single-step grid at these toy sizes; at realistic B*S add a leading
    # per-batch grid axis marked "parallel" (uses both v7x TensorCores).
    compiler_params=pltpu.CompilerParams(dimension_semantics=("arbitrary",)),
)


def pack_params(params):
    """One-time packing (NOT in the per-call hot path).

    Fuses Q/K/V weights (Q pre-scaled by 1/sqrt(head_dim)), pads to 128 output
    lanes, casts matmul operands to bf16, and builds the constant cross-batch
    block mask for the merged (B*S) score matrix."""
    scale = 1.0 / math.sqrt(HEAD_DIM)
    zeros_w = jnp.zeros((H, QKV_PAD - 3 * H), jnp.float32)
    zeros_b = jnp.zeros((1, QKV_PAD - 3 * H), jnp.float32)
    wqkv = jnp.concatenate(
        [params["wq"] * scale, params["wk"], params["wv"], zeros_w], axis=1
    ).astype(jnp.bfloat16)                                           # (H, 128)
    bqkv = jnp.concatenate(
        [params["bq"] * scale, params["bk"], params["bv"], zeros_b], axis=1
    ).astype(jnp.float32)                                            # (1, 128)

    # -1e9 on every cross-batch (query, key) pair so merging batches into one
    # (BS,BS) score matrix never mixes batch elements.
    same_batch = jnp.kron(jnp.eye(B, dtype=jnp.float32),
                          jnp.ones((S, S), jnp.float32))             # (BS, BS)
    block_mask = (1.0 - same_batch) * (-1e9)
    # TODO(synk): at realistic B*S, replace the dense (BS,BS) block mask with a
    # per-batch grid axis (or in-kernel iota masking) to avoid (B*S)^2 VMEM.

    packed = {
        "wqkv": wqkv,
        "bqkv": bqkv,
        "wo": params["wo"].astype(jnp.bfloat16),
        "bo": params["bo"].astype(jnp.float32),
        "gamma": params["gamma"].astype(jnp.float32),
        "beta": params["beta"].astype(jnp.float32),
        "block_mask": block_mask,
    }
    return jax.tree_util.tree_map(jnp.asarray, packed)


@jax.jit
def bert_attention(x, attention_mask, packed):
    """Hot path: reshapes + one pallas_call + slice.  All weight packing and
    the constant block mask live in `packed` (built once by pack_params)."""
    x2d = x.reshape(BS, H).astype(jnp.float32)
    keymask = attention_mask.reshape(1, BS).astype(jnp.float32)
    out = _fused_call(x2d, keymask, packed["block_mask"],
                      packed["wqkv"], packed["bqkv"], packed["wo"],
                      packed["bo"], packed["gamma"], packed["beta"])
    return out[:, :H].reshape(B, S, H)


def init_params(key):
    """Deterministic synthetic parameters. Linear weights stored as (in, out)."""
    ks = jax.random.split(key, 8)
    scale = 0.02
    return {
        "wq": scale * jax.random.normal(ks[0], (H, H), jnp.float32),
        "bq": scale * jax.random.normal(ks[1], (1, H), jnp.float32),
        "wk": scale * jax.random.normal(ks[2], (H, H), jnp.float32),
        "bk": scale * jax.random.normal(ks[3], (1, H), jnp.float32),
        "wv": scale * jax.random.normal(ks[4], (H, H), jnp.float32),
        "bv": scale * jax.random.normal(ks[5], (1, H), jnp.float32),
        "wo": scale * jax.random.normal(ks[6], (H, H), jnp.float32),
        "bo": scale * jax.random.normal(ks[7], (1, H), jnp.float32),
        "gamma": jnp.ones((1, H), jnp.float32),
        "beta": jnp.zeros((1, H), jnp.float32),
    }


def reference(x, attention_mask, params):
    """Plain-JAX f32 reference of the same forward pass (eval mode, PyTorch math)."""
    mask = attention_mask.reshape(B, 1, 1, S)
    q = x @ params["wq"] + params["bq"]
    k = x @ params["wk"] + params["bk"]
    v = x @ params["wv"] + params["bv"]

    def split(t):  # (B, S, H) -> (B, NH, S, D)
        return t.reshape(B, S, NUM_HEADS, HEAD_DIM).transpose(0, 2, 1, 3)

    qh, kh, vh = split(q), split(k), split(v)
    scores = jnp.einsum("bnqd,bnkd->bnqk", qh, kh) / math.sqrt(HEAD_DIM)
    scores = scores + mask
    probs = jax.nn.softmax(scores, axis=-1)
    ctx = jnp.einsum("bnqk,bnkd->bnqd", probs, vh)
    ctx = ctx.transpose(0, 2, 1, 3).reshape(B, S, H)
    proj = ctx @ params["wo"] + params["bo"]
    y = proj + x
    mu = y.mean(-1, keepdims=True)
    var = ((y - mu) ** 2).mean(-1, keepdims=True)
    return params["gamma"] * (y - mu) / jnp.sqrt(var + LN_EPS) + params["beta"]


if __name__ == "__main__":
    key = jax.random.PRNGKey(0)
    k_x, k_m, k_p = jax.random.split(key, 3)

    x = jax.random.normal(k_x, (B, S, H), jnp.float32)
    # additive BERT mask: last two tokens of batch 1 masked out
    keep = jnp.ones((B, S), jnp.float32).at[1, -2:].set(0.0)
    attention_mask = ((1.0 - keep) * -10000.0).reshape(B, 1, 1, S)

    params = init_params(k_p)
    # One-time packing (hoisted out of the per-call hot path).
    packed = jax.block_until_ready(pack_params(params))

    out = bert_attention(x, attention_mask, packed)
    out = jax.block_until_ready(out)

    ref = reference(x, attention_mask, params)
    assert out.shape == (B, S, H)
    # bf16 MXU operands (f32 accumulation) + approximate EUP reciprocal in the
    # kernel vs. a pure-f32 reference -> relaxed but still tight tolerance.
    assert jnp.allclose(out, ref, atol=3e-3, rtol=3e-3), "mismatch vs JAX reference"

    print("KERNEL_OK")
</pallas_src>

<mosaic_0001>
module attributes {stable_mosaic.version = 11 : i64} {
  func.func @bert_attention_kernel(%arg0: i32, %arg1: memref<16x32xf32, #tpu.memory_space<vmem>>, %arg2: memref<1x16xf32, #tpu.memory_space<vmem>>, %arg3: memref<16x16xf32, #tpu.memory_space<vmem>>, %arg4: memref<32x128xbf16, #tpu.memory_space<vmem>>, %arg5: memref<1x128xf32, #tpu.memory_space<vmem>>, %arg6: memref<32x32xbf16, #tpu.memory_space<vmem>>, %arg7: memref<1x32xf32, #tpu.memory_space<vmem>>, %arg8: memref<1x32xf32, #tpu.memory_space<vmem>>, %arg9: memref<1x32xf32, #tpu.memory_space<vmem>>, %arg10: memref<16x128xf32, #tpu.memory_space<vmem>>) attributes {dimension_semantics = [#tpu.dimension_semantics<arbitrary>], iteration_bounds = array<i64: 1>, scalar_prefetch = 0 : i64, scratch_operands = 0 : i64, tpu.core_type = #tpu.core_type<tc>, window_params = [{pipeline_mode = #tpu.pipeline_mode<synchronous>, transform_indices = @transform_0, window_bounds = array<i64: 16, 32>}, {pipeline_mode = #tpu.pipeline_mode<synchronous>, transform_indices = @transform_1, window_bounds = array<i64: 1, 16>}, {pipeline_mode = #tpu.pipeline_mode<synchronous>, transform_indices = @transform_2, window_bounds = array<i64: 16, 16>}, {pipeline_mode = #tpu.pipeline_mode<synchronous>, transform_indices = @transform_3, window_bounds = array<i64: 32, 128>}, {pipeline_mode = #tpu.pipeline_mode<synchronous>, transform_indices = @transform_4, window_bounds = array<i64: 1, 128>}, {pipeline_mode = #tpu.pipeline_mode<synchronous>, transform_indices = @transform_5, window_bounds = array<i64: 32, 32>}, {pipeline_mode = #tpu.pipeline_mode<synchronous>, transform_indices = @transform_6, window_bounds = array<i64: 1, 32>}, {pipeline_mode = #tpu.pipeline_mode<synchronous>, transform_indices = @transform_7, window_bounds = array<i64: 1, 32>}, {pipeline_mode = #tpu.pipeline_mode<synchronous>, transform_indices = @transform_8, window_bounds = array<i64: 1, 32>}, {pipeline_mode = #tpu.pipeline_mode<synchronous>, transform_indices = @transform_9, window_bounds = array<i64: 16, 128>}]} {
    %c0 = arith.constant 0 : index
    %c0_0 = arith.constant 0 : index
    %0 = vector.load %arg1[%c0, %c0_0] : memref<16x32xf32, #tpu.memory_space<vmem>>, vector<16x32xf32>
    %c0_1 = arith.constant 0 : index
    %c0_2 = arith.constant 0 : index
    %1 = vector.load %arg3[%c0_1, %c0_2] : memref<16x16xf32, #tpu.memory_space<vmem>>, vector<16x16xf32>
    %c0_3 = arith.constant 0 : index
    %c0_4 = arith.constant 0 : index
    %2 = vector.load %arg2[%c0_3, %c0_4] : memref<1x16xf32, #tpu.memory_space<vmem>>, vector<1x16xf32>
    %3 = vector.broadcast %2 : vector<1x16xf32> to vector<16x16xf32>
    %4 = arith.addf %1, %3 : vector<16x16xf32>
    %5 = arith.truncf %0 : vector<16x32xf32> to vector<16x32xbf16>
    %c0_5 = arith.constant 0 : index
    %c0_6 = arith.constant 0 : index
    %6 = vector.load %arg4[%c0_5, %c0_6] : memref<32x128xbf16, #tpu.memory_space<vmem>>, vector<32x128xbf16>
    %cst = arith.constant dense<0.000000e+00> : vector<16x128xf32>
    %7 = tpu.matmul %5, %6, %cst {dimension_numbers = #tpu.dot_dimension_numbers<[1], [0], [0], [1], [0, 0, 1, 1], [], []>} : vector<16x32xbf16>, vector<32x128xbf16>, vector<16x128xf32> -> vector<16x128xf32>
    %c0_7 = arith.constant 0 : index
    %c0_8 = arith.constant 0 : index
    %8 = vector.load %arg5[%c0_7, %c0_8] : memref<1x128xf32, #tpu.memory_space<vmem>>, vector<1x128xf32>
    %9 = vector.broadcast %8 : vector<1x128xf32> to vector<16x128xf32>
    %10 = arith.addf %7, %9 : vector<16x128xf32>
    %11 = vector.extract_strided_slice %10 {offsets = [0, 0], sizes = [16, 32], strides = [1, 1]} : vector<16x128xf32> to vector<16x32xf32>
    %12 = arith.truncf %11 : vector<16x32xf32> to vector<16x32xbf16>
    %13 = vector.extract_strided_slice %10 {offsets = [0, 32], sizes = [16, 32], strides = [1, 1]} : vector<16x128xf32> to vector<16x32xf32>
    %14 = arith.truncf %13 : vector<16x32xf32> to vector<16x32xbf16>
    %15 = vector.extract_strided_slice %10 {offsets = [0, 64], sizes = [16, 32], strides = [1, 1]} : vector<16x128xf32> to vector<16x32xf32>
    %16 = arith.truncf %15 : vector<16x32xf32> to vector<16x32xbf16>
    %17 = vector.extract_strided_slice %12 {offsets = [0, 0], sizes = [16, 8], strides = [1, 1]} : vector<16x32xbf16> to vector<16x8xbf16>
    %18 = vector.extract_strided_slice %14 {offsets = [0, 0], sizes = [16, 8], strides = [1, 1]} : vector<16x32xbf16> to vector<16x8xbf16>
    %19 = vector.extract_strided_slice %16 {offsets = [0, 0], sizes = [16, 8], strides = [1, 1]} : vector<16x32xbf16> to vector<16x8xbf16>
    %cst_9 = arith.constant dense<0.000000e+00> : vector<16x16xf32>
    %20 = tpu.matmul %17, %18, %cst_9 {dimension_numbers = #tpu.dot_dimension_numbers<[1], [1], [0], [0], [0, 0, 1, 0], [], []>} : vector<16x8xbf16>, vector<16x8xbf16>, vector<16x16xf32> -> vector<16x16xf32>
    %21 = arith.addf %20, %4 : vector<16x16xf32>
    %cst_10 = arith.constant dense<0xFF800000> : vector<16xf32>
    %22 = vector.multi_reduction <maximumf>, %21, %cst_10 [1] : vector<16x16xf32> to vector<16xf32>
    %23 = vector.shape_cast %22 : vector<16xf32> to vector<16x1xf32>
    %24 = vector.broadcast %23 : vector<16x1xf32> to vector<16x16xf32>
    %25 = arith.subf %21, %24 : vector<16x16xf32>
    %26 = math.exp %25 : vector<16x16xf32>
    %cst_11 = arith.constant dense<0.000000e+00> : vector<16xf32>
    %27 = vector.multi_reduction <add>, %26, %cst_11 [1] : vector<16x16xf32> to vector<16xf32>
    %28 = vector.shape_cast %27 : vector<16xf32> to vector<16x1xf32>
    %29 = tpu.reciprocal %28 {approx = true} : vector<16x1xf32> -> vector<16x1xf32>
    %30 = vector.broadcast %29 : vector<16x1xf32> to vector<16x16xf32>
    %31 = arith.mulf %26, %30 : vector<16x16xf32>
    %32 = arith.truncf %31 : vector<16x16xf32> to vector<16x16xbf16>
    %cst_12 = arith.constant dense<0.000000e+00> : vector<16x8xf32>
    %33 = tpu.matmul %32, %19, %cst_12 {dimension_numbers = #tpu.dot_dimension_numbers<[1], [0], [0], [1], [0, 0, 1, 1], [], []>} : vector<16x16xbf16>, vector<16x8xbf16>, vector<16x8xf32> -> vector<16x8xf32>
    %34 = vector.extract_strided_slice %12 {offsets = [0, 8], sizes = [16, 8], strides = [1, 1]} : vector<16x32xbf16> to vector<16x8xbf16>
    %35 = vector.extract_strided_slice %14 {offsets = [0, 8], sizes = [16, 8], strides = [1, 1]} : vector<16x32xbf16> to vector<16x8xbf16>
    %36 = vector.extract_strided_slice %16 {offsets = [0, 8], sizes = [16, 8], strides = [1, 1]} : vector<16x32xbf16> to vector<16x8xbf16>
    %cst_13 = arith.constant dense<0.000000e+00> : vector<16x16xf32>
    %37 = tpu.matmul %34, %35, %cst_13 {dimension_numbers = #tpu.dot_dimension_numbers<[1], [1], [0], [0], [0, 0, 1, 0], [], []>} : vector<16x8xbf16>, vector<16x8xbf16>, vector<16x16xf32> -> vector<16x16xf32>
    %38 = arith.addf %37, %4 : vector<16x16xf32>
    %cst_14 = arith.constant dense<0xFF800000> : vector<16xf32>
    %39 = vector.multi_reduction <maximumf>, %38, %cst_14 [1] : vector<16x16xf32> to vector<16xf32>
    %40 = vector.shape_cast %39 : vector<16xf32> to vector<16x1xf32>
    %41 = vector.broadcast %40 : vector<16x1xf32> to vector<16x16xf32>
    %42 = arith.subf %38, %41 : vector<16x16xf32>
    %43 = math.exp %42 : vector<16x16xf32>
    %cst_15 = arith.constant dense<0.000000e+00> : vector<16xf32>
    %44 = vector.multi_reduction <add>, %43, %cst_15 [1] : vector<16x16xf32> to vector<16xf32>
    %45 = vector.shape_cast %44 : vector<16xf32> to vector<16x1xf32>
    %46 = tpu.reciprocal %45 {approx = true} : vector<16x1xf32> -> vector<16x1xf32>
    %47 = vector.broadcast %46 : vector<16x1xf32> to vector<16x16xf32>
    %48 = arith.mulf %43, %47 : vector<16x16xf32>
    %49 = arith.truncf %48 : vector<16x16xf32> to vector<16x16xbf16>
    %cst_16 = arith.constant dense<0.000000e+00> : vector<16x8xf32>
    %50 = tpu.matmul %49, %36, %cst_16 {dimension_numbers = #tpu.dot_dimension_numbers<[1], [0], [0], [1], [0, 0, 1, 1], [], []>} : vector<16x16xbf16>, vector<16x8xbf16>, vector<16x8xf32> -> vector<16x8xf32>
    %51 = vector.extract_strided_slice %12 {offsets = [0, 16], sizes = [16, 8], strides = [1, 1]} : vector<16x32xbf16> to vector<16x8xbf16>
    %52 = vector.extract_strided_slice %14 {offsets = [0, 16], sizes = [16, 8], strides = [1, 1]} : vector<16x32xbf16> to vector<16x8xbf16>
    %53 = vector.extract_strided_slice %16 {offsets = [0, 16], sizes = [16, 8], strides = [1, 1]} : vector<16x32xbf16> to vector<16x8xbf16>
    %cst_17 = arith.constant dense<0.000000e+00> : vector<16x16xf32>
    %54 = tpu.matmul %51, %52, %cst_17 {dimension_numbers = #tpu.dot_dimension_numbers<[1], [1], [0], [0], [0, 0, 1, 0], [], []>} : vector<16x8xbf16>, vector<16x8xbf16>, vector<16x16xf32> -> vector<16x16xf32>
    %55 = arith.addf %54, %4 : vector<16x16xf32>
    %cst_18 = arith.constant dense<0xFF800000> : vector<16xf32>
    %56 = vector.multi_reduction <maximumf>, %55, %cst_18 [1] : vector<16x16xf32> to vector<16xf32>
    %57 = vector.shape_cast %56 : vector<16xf32> to vector<16x1xf32>
    %58 = vector.broadcast %57 : vector<16x1xf32> to vector<16x16xf32>
    %59 = arith.subf %55, %58 : vector<16x16xf32>
    %60 = math.exp %59 : vector<16x16xf32>
    %cst_19 = arith.constant dense<0.000000e+00> : vector<16xf32>
    %61 = vector.multi_reduction <add>, %60, %cst_19 [1] : vector<16x16xf32> to vector<16xf32>
    %62 = vector.shape_cast %61 : vector<16xf32> to vector<16x1xf32>
    %63 = tpu.reciprocal %62 {approx = true} : vector<16x1xf32> -> vector<16x1xf32>
    %64 = vector.broadcast %63 : vector<16x1xf32> to vector<16x16xf32>
    %65 = arith.mulf %60, %64 : vector<16x16xf32>
    %66 = arith.truncf %65 : vector<16x16xf32> to vector<16x16xbf16>
    %cst_20 = arith.constant dense<0.000000e+00> : vector<16x8xf32>
    %67 = tpu.matmul %66, %53, %cst_20 {dimension_numbers = #tpu.dot_dimension_numbers<[1], [0], [0], [1], [0, 0, 1, 1], [], []>} : vector<16x16xbf16>, vector<16x8xbf16>, vector<16x8xf32> -> vector<16x8xf32>
    %68 = vector.extract_strided_slice %12 {offsets = [0, 24], sizes = [16, 8], strides = [1, 1]} : vector<16x32xbf16> to vector<16x8xbf16>
    %69 = vector.extract_strided_slice %14 {offsets = [0, 24], sizes = [16, 8], strides = [1, 1]} : vector<16x32xbf16> to vector<16x8xbf16>
    %70 = vector.extract_strided_slice %16 {offsets = [0, 24], sizes = [16, 8], strides = [1, 1]} : vector<16x32xbf16> to vector<16x8xbf16>
    %cst_21 = arith.constant dense<0.000000e+00> : vector<16x16xf32>
    %71 = tpu.matmul %68, %69, %cst_21 {dimension_numbers = #tpu.dot_dimension_numbers<[1], [1], [0], [0], [0, 0, 1, 0], [], []>} : vector<16x8xbf16>, vector<16x8xbf16>, vector<16x16xf32> -> vector<16x16xf32>
    %72 = arith.addf %71, %4 : vector<16x16xf32>
    %cst_22 = arith.constant dense<0xFF800000> : vector<16xf32>
    %73 = vector.multi_reduction <maximumf>, %72, %cst_22 [1] : vector<16x16xf32> to vector<16xf32>
    %74 = vector.shape_cast %73 : vector<16xf32> to vector<16x1xf32>
    %75 = vector.broadcast %74 : vector<16x1xf32> to vector<16x16xf32>
    %76 = arith.subf %72, %75 : vector<16x16xf32>
    %77 = math.exp %76 : vector<16x16xf32>
    %cst_23 = arith.constant dense<0.000000e+00> : vector<16xf32>
    %78 = vector.multi_reduction <add>, %77, %cst_23 [1] : vector<16x16xf32> to vector<16xf32>
    %79 = vector.shape_cast %78 : vector<16xf32> to vector<16x1xf32>
    %80 = tpu.reciprocal %79 {approx = true} : vector<16x1xf32> -> vector<16x1xf32>
    %81 = vector.broadcast %80 : vector<16x1xf32> to vector<16x16xf32>
    %82 = arith.mulf %77, %81 : vector<16x16xf32>
    %83 = arith.truncf %82 : vector<16x16xf32> to vector<16x16xbf16>
    %cst_24 = arith.constant dense<0.000000e+00> : vector<16x8xf32>
    %84 = tpu.matmul %83, %70, %cst_24 {dimension_numbers = #tpu.dot_dimension_numbers<[1], [0], [0], [1], [0, 0, 1, 1], [], []>} : vector<16x16xbf16>, vector<16x8xbf16>, vector<16x8xf32> -> vector<16x8xf32>
    %85 = tpu.concatenate %33, %50, %67, %84 in 1 : vector<16x8xf32>, vector<16x8xf32>, vector<16x8xf32>, vector<16x8xf32> -> vector<16x32xf32>
    %86 = arith.truncf %85 : vector<16x32xf32> to vector<16x32xbf16>
    %c0_25 = arith.constant 0 : index
    %c0_26 = arith.constant 0 : index
    %87 = vector.load %arg6[%c0_25, %c0_26] : memref<32x32xbf16, #tpu.memory_space<vmem>>, vector<32x32xbf16>
    %cst_27 = arith.constant dense<0.000000e+00> : vector<16x32xf32>
    %88 = tpu.matmul %86, %87, %cst_27 {dimension_numbers = #tpu.dot_dimension_numbers<[1], [0], [0], [1], [0, 0, 1, 1], [], []>} : vector<16x32xbf16>, vector<32x32xbf16>, vector<16x32xf32> -> vector<16x32xf32>
    %c0_28 = arith.constant 0 : index
    %c0_29 = arith.constant 0 : index
    %89 = vector.load %arg7[%c0_28, %c0_29] : memref<1x32xf32, #tpu.memory_space<vmem>>, vector<1x32xf32>
    %90 = vector.broadcast %89 : vector<1x32xf32> to vector<16x32xf32>
    %91 = arith.addf %88, %90 : vector<16x32xf32>
    %92 = arith.addf %91, %0 : vector<16x32xf32>
    %cst_30 = arith.constant dense<0.000000e+00> : vector<16xf32>
    %93 = vector.multi_reduction <add>, %92, %cst_30 [1] : vector<16x32xf32> to vector<16xf32>
    %94 = vector.shape_cast %93 : vector<16xf32> to vector<16x1xf32>
    %cst_31 = arith.constant 3.200000e+01 : f32
    %95 = vector.broadcast %cst_31 : f32 to vector<16x1xf32>
    %96 = arith.divf %94, %95 : vector<16x1xf32>
    %97 = vector.broadcast %96 : vector<16x1xf32> to vector<16x32xf32>
    %98 = arith.subf %92, %97 : vector<16x32xf32>
    %99 = arith.mulf %98, %98 : vector<16x32xf32>
    %cst_32 = arith.constant dense<0.000000e+00> : vector<16xf32>
    %100 = vector.multi_reduction <add>, %99, %cst_32 [1] : vector<16x32xf32> to vector<16xf32>
    %101 = vector.shape_cast %100 : vector<16xf32> to vector<16x1xf32>
    %cst_33 = arith.constant 3.200000e+01 : f32
    %102 = vector.broadcast %cst_33 : f32 to vector<16x1xf32>
    %103 = arith.divf %101, %102 : vector<16x1xf32>
    %104 = vector.broadcast %96 : vector<16x1xf32> to vector<16x32xf32>
    %105 = arith.subf %92, %104 : vector<16x32xf32>
    %cst_34 = arith.constant 9.99999996E-13 : f32
    %106 = vector.broadcast %cst_34 : f32 to vector<16x1xf32>
    %107 = arith.addf %103, %106 : vector<16x1xf32>
    %108 = math.rsqrt %107 : vector<16x1xf32>
    %109 = vector.broadcast %108 : vector<16x1xf32> to vector<16x32xf32>
    %110 = arith.mulf %105, %109 : vector<16x32xf32>
    %c0_35 = arith.constant 0 : index
    %c0_36 = arith.constant 0 : index
    %111 = vector.load %arg8[%c0_35, %c0_36] : memref<1x32xf32, #tpu.memory_space<vmem>>, vector<1x32xf32>
    %112 = vector.broadcast %111 : vector<1x32xf32> to vector<16x32xf32>
    %113 = arith.mulf %112, %110 : vector<16x32xf32>
    %c0_37 = arith.constant 0 : index
    %c0_38 = arith.constant 0 : index
    %114 = vector.load %arg9[%c0_37, %c0_38] : memref<1x32xf32, #tpu.memory_space<vmem>>, vector<1x32xf32>
    %115 = vector.broadcast %114 : vector<1x32xf32> to vector<16x32xf32>
    %116 = arith.addf %113, %115 : vector<16x32xf32>
    %cst_39 = arith.constant 0.000000e+00 : f32
    %117 = vector.broadcast %cst_39 : f32 to vector<16x96xf32>
    %118 = tpu.concatenate %116, %117 in 1 : vector<16x32xf32>, vector<16x96xf32> -> vector<16x128xf32>
    %c0_40 = arith.constant 0 : index
    %c0_41 = arith.constant 0 : index
    %119 = vector.load %arg10[%c0_40, %c0_41] : memref<16x128xf32, #tpu.memory_space<vmem>>, vector<16x128xf32>
    tpu.vector_store %arg10[%c0_40, %c0_41], %118 {strides = array<i32>} : memref<16x128xf32, #tpu.memory_space<vmem>>, vector<16x128xf32>,
    return
  }
  func.func @transform_0(%arg0: i32) -> (i32, i32) {
    %c0_i32 = arith.constant 0 : i32
    %c0_i32_0 = arith.constant 0 : i32
    %c0_i32_1 = arith.constant 0 : i32
    return %c0_i32, %c0_i32_0 : i32, i32
  }
  func.func @transform_1(%arg0: i32) -> (i32, i32) {
    %c0_i32 = arith.constant 0 : i32
    %c0_i32_0 = arith.constant 0 : i32
    %c0_i32_1 = arith.constant 0 : i32
    return %c0_i32, %c0_i32_0 : i32, i32
  }
  func.func @transform_2(%arg0: i32) -> (i32, i32) {
    %c0_i32 = arith.constant 0 : i32
    %c0_i32_0 = arith.constant 0 : i32
    %c0_i32_1 = arith.constant 0 : i32
    return %c0_i32, %c0_i32_0 : i32, i32
  }
  func.func @transform_3(%arg0: i32) -> (i32, i32) {
    %c0_i32 = arith.constant 0 : i32
    %c0_i32_0 = arith.constant 0 : i32
    %c0_i32_1 = arith.constant 0 : i32
    return %c0_i32, %c0_i32_0 : i32, i32
  }
  func.func @transform_4(%arg0: i32) -> (i32, i32) {
    %c0_i32 = arith.constant 0 : i32
    %c0_i32_0 = arith.constant 0 : i32
    %c0_i32_1 = arith.constant 0 : i32
    return %c0_i32, %c0_i32_0 : i32, i32
  }
  func.func @transform_5(%arg0: i32) -> (i32, i32) {
    %c0_i32 = arith.constant 0 : i32
    %c0_i32_0 = arith.constant 0 : i32
    %c0_i32_1 = arith.constant 0 : i32
    return %c0_i32, %c0_i32_0 : i32, i32
  }
  func.func @transform_6(%arg0: i32) -> (i32, i32) {
    %c0_i32 = arith.constant 0 : i32
    %c0_i32_0 = arith.constant 0 : i32
    %c0_i32_1 = arith.constant 0 : i32
    return %c0_i32, %c0_i32_0 : i32, i32
  }
  func.func @transform_7(%arg0: i32) -> (i32, i32) {
    %c0_i32 = arith.constant 0 : i32
    %c0_i32_0 = arith.constant 0 : i32
    %c0_i32_1 = arith.constant 0 : i32
    return %c0_i32, %c0_i32_0 : i32, i32
  }
  func.func @transform_8(%arg0: i32) -> (i32, i32) {
    %c0_i32 = arith.constant 0 : i32
    %c0_i32_0 = arith.constant 0 : i32
    %c0_i32_1 = arith.constant 0 : i32
    return %c0_i32, %c0_i32_0 : i32, i32
  }
  func.func @transform_9(%arg0: i32) -> (i32, i32) {
    %c0_i32 = arith.constant 0 : i32
    %c0_i32_0 = arith.constant 0 : i32
    %c0_i32_1 = arith.constant 0 : i32
    return %c0_i32, %c0_i32_0 : i32, i32
  }
}

</mosaic_0001>

<llo_original>
// kernel: bert_attention.1
$region0: #{bert_attention.1}
  #allocation0 [shape = 'u32[]', space=smem, size = 0x4, offset = 0x4, fixed_abs, tag = 'smem constant byte address 0x4 - core index']
  #allocation1 [shape = 'u32[144,128]{1,0:T(1,128)}', space=vmem, size = 0x12000, scoped, tag = 'internal scratch']
  %s0 = inlined_call_operand.hbm [shape: f32[16,32], index: 0, kind: input, shape index: {}]
  %s1 = inlined_call_operand.vmem [shape: f32[1,16], index: 1, kind: input, shape index: {}]
  %s2 = inlined_call_operand.vmem [shape: f32[16,16], index: 2, kind: input, shape index: {}]
  %s3 = inlined_call_operand.hbm [shape: bf16[32,128], index: 3, kind: input, shape index: {}]
  %s4 = inlined_call_operand.vmem [shape: f32[1,128], index: 4, kind: input, shape index: {}]
  %s5 = inlined_call_operand.hbm [shape: bf16[32,32], index: 5, kind: input, shape index: {}]
  %s6 = inlined_call_operand.vmem [shape: f32[1,32], index: 6, kind: input, shape index: {}]
  %s7 = inlined_call_operand.vmem [shape: f32[1,32], index: 7, kind: input, shape index: {}]
  %s8 = inlined_call_operand.hbm [shape: f32[1,32], index: 8, kind: input, shape index: {}]
  %s9 = inlined_call_operand.vmem [shape: f32[16,128], index: 9, kind: output, shape index: {}]
  %s10 = sld [smem:[#allocation0]]
  $region62: #{bert_attention.1} parent=0
    _
  %s12 = ssub.s32 1, %s10
  %s13 = scalar_select 0, %s12, %s10
  $region1: #{bert_attention.1} parent=0
    #allocation2 [shape = 'u8[8192]{0}', space=vmem, size = 0x2000, scoped, tag = 'input window, operand 0, single buffered']
    #allocation3 [shape = 's32[1]{0}', space=sflag, size = 0x4, scoped, tag = 'scoped memory for bert_attention.1']
    #allocation4 [shape = 'u8[8192]{0}', space=vmem, size = 0x2000, scoped, tag = 'input window, operand 3, single buffered']
    #allocation5 [shape = 's32[1]{0}', space=sflag, size = 0x4, scoped, tag = 'scoped memory for bert_attention.1']
    #allocation6 [shape = 'u8[8192]{0}', space=vmem, size = 0x2000, scoped, tag = 'input window, operand 5, single buffered']
    #allocation7 [shape = 'u8[512]{0}', space=vmem, size = 0x400, scoped, tag = 'input window, operand 8, single buffered']
    #allocation8 [shape = 's32[1]{0}', space=sflag, size = 0x4, scoped, tag = 'scoped memory for bert_attention.1']
    %14 = vsyncpa [#allocation3], 0
    %15 = vsyncpa [#allocation5], 0
    %16 = vsyncpa [#allocation8], 0
    // Predicated region
    $region2: #{bert_attention.1} parent=1 // pred_check
      _
    $region3: #{bert_attention.1} parent=1 // pred_check_branch
      %18 = sbr.rel (0) target = $region5
    $region4: #{bert_attention.1} parent=1 // pred_region
      %s20 = ssub.s32 256, 256
      %21 = vsyncadd [#allocation3], %s20
      %s22 = sshll.u32 [#allocation2], 4
      %s23 = int_to_ptr.vmem [resolvable:$true] %s22
      %28 = dma.hbm_to_vmem [thread:$0]  %s0, 256, %s23, [#allocation3], 128, 128, 8
    $region5: #{bert_attention.1} parent=1 // pred_fallthru
      _
    // Predicated region
    $region6: #{bert_attention.1} parent=1 // pred_check
      _
    $region7: #{bert_attention.1} parent=1 // pred_check_branch
      %30 = sbr.rel (0) target = $region9
    $region8: #{bert_attention.1} parent=1 // pred_region
      _
    $region9: #{bert_attention.1} parent=1 // pred_fallthru
      _
    // Predicated region
    $region10: #{bert_attention.1} parent=1 // pred_check
      _
    $region11: #{bert_attention.1} parent=1 // pred_check_branch
      %32 = sbr.rel (0) target = $region13
    $region12: #{bert_attention.1} parent=1 // pred_region
      _
    $region13: #{bert_attention.1} parent=1 // pred_fallthru
      _
    // Predicated region
    $region14: #{bert_attention.1} parent=1 // pred_check
      _
    $region15: #{bert_attention.1} parent=1 // pred_check_branch
      %34 = sbr.rel (0) target = $region17
    $region16: #{bert_attention.1} parent=1 // pred_region
      %s36 = ssub.s32 256, 256
      %37 = vsyncadd [#allocation5], %s36
      %s38 = sshll.u32 [#allocation4], 4
      %s39 = int_to_ptr.vmem [resolvable:$true] %s38
      %44 = dma.hbm_to_vmem [thread:$0]  %s3, 256, %s39, [#allocation5], 64, 64, 4
    $region17: #{bert_attention.1} parent=1 // pred_fallthru
      _
    // Predicated region
    $region18: #{bert_attention.1} parent=1 // pred_check
      _
    $region19: #{bert_attention.1} parent=1 // pred_check_branch
      %46 = sbr.rel (0) target = $region21
    $region20: #{bert_attention.1} parent=1 // pred_region
      _
    $region21: #{bert_attention.1} parent=1 // pred_fallthru
      _
    // Predicated region
    $region22: #{bert_attention.1} parent=1 // pred_check
      _
    $region23: #{bert_attention.1} parent=1 // pred_check_branch
      %48 = sbr.rel (0) target = $region25
    $region24: #{bert_attention.1} parent=1 // pred_region
      %s50 = ssub.s32 256, 256
      %51 = vsyncadd [#allocation5], %s50
      %s52 = sshll.u32 [#allocation6], 4
      %s53 = int_to_ptr.vmem [resolvable:$true] %s52
      %58 = dma.hbm_to_vmem [thread:$0]  %s5, 256, %s53, [#allocation5], 64, 64, 4
    $region25: #{bert_attention.1} parent=1 // pred_fallthru
      _
    // Predicated region
    $region26: #{bert_attention.1} parent=1 // pred_check
      _
    $region27: #{bert_attention.1} parent=1 // pred_check_branch
      %60 = sbr.rel (0) target = $region29
    $region28: #{bert_attention.1} parent=1 // pred_region
      _
    $region29: #{bert_attention.1} parent=1 // pred_fallthru
      _
    // Predicated region
    $region30: #{bert_attention.1} parent=1 // pred_check
      _
    $region31: #{bert_attention.1} parent=1 // pred_check_branch
      %62 = sbr.rel (0) target = $region33
    $region32: #{bert_attention.1} parent=1 // pred_region
      _
    $region33: #{bert_attention.1} parent=1 // pred_fallthru
      _
    // Predicated region
    $region34: #{bert_attention.1} parent=1 // pred_check
      _
    $region35: #{bert_attention.1} parent=1 // pred_check_branch
      %64 = sbr.rel (0) target = $region37
    $region36: #{bert_attention.1} parent=1 // pred_region
      %s66 = ssub.s32 16, 16
      %67 = vsyncadd [#allocation8], %s66
      %s69 = sshll.u32 [#allocation7], 4
      %s70 = int_to_ptr.vmem [resolvable:$true] %s69
      %72 = dma.hbm_to_vmem [thread:$0]  %s8, 16, %s70, [#allocation8]
    $region37: #{bert_attention.1} parent=1 // pred_fallthru
      _
    // Predicated region
    $region38: #{bert_attention.1} parent=1 // pred_check
      _
    $region39: #{bert_attention.1} parent=1 // pred_check_branch
      %74 = sbr.rel (0) target = $region41
    $region40: #{bert_attention.1} parent=1 // pred_region
      %75 = dma.done [#allocation3], 256
    $region41: #{bert_attention.1} parent=1 // pred_fallthru
      _
    // Predicated region
    $region42: #{bert_attention.1} parent=1 // pred_check
      _
    $region43: #{bert_attention.1} parent=1 // pred_check_branch
      %77 = sbr.rel (0) target = $region45
    $region44: #{bert_attention.1} parent=1 // pred_region
      %78 = dma.done [#allocation5], 256
    $region45: #{bert_attention.1} parent=1 // pred_fallthru
      _
    // Predicated region
    $region46: #{bert_attention.1} parent=1 // pred_check
      _
    $region47: #{bert_attention.1} parent=1 // pred_check_branch
      %80 = sbr.rel (0) target = $region49
    $region48: #{bert_attention.1} parent=1 // pred_region
      %81 = dma.done [#allocation5], 256
    $region49: #{bert_attention.1} parent=1 // pred_fallthru
      _
    // Predicated region
    $region50: #{bert_attention.1} parent=1 // pred_check
      _
    $region51: #{bert_attention.1} parent=1 // pred_check_branch
      %83 = sbr.rel (0) target = $region53
    $region52: #{bert_attention.1} parent=1 // pred_region
      %84 = dma.done [#allocation8], 16
    $region53: #{bert_attention.1} parent=1 // pred_fallthru
      _
    %v86 = vld [vmem:[#allocation2] sm:$0xff]
    %v87 = vld [vmem:[#allocation2 + $0x8] sm:$0xff]
    %v88 = vld [vmem:[%s2] sm:$0xff]
    %v89 = vld [vmem:[%s2 + $0x8] sm:$0xff]
    %v90 = vld [vmem:[%s1] sm:$0x1]
    %v92 = vlaneseq
    %v93 = vshrl.u32 %v92, 7
    %v94 = vsub.s32 0, %v93
    %v95 = vrot.slane %v90, %v94
    %v97 = vadd.f32 %v88, %v95
    %v98 = vadd.f32 %v89, %v95
    %v99 = vpack.c.bf16 %v87, %v86
    %v100 = vld [vmem:[#allocation4] sm:$0xf]
    %v101 = vld [vmem:[#allocation4 + $0x4] sm:$0xf]
    %v102 = vld [vmem:[#allocation4 + $0x8] sm:$0xf]
    %v103 = vld [vmem:[#allocation4 + $0xc] sm:$0xf]
    %v104 = vld [vmem:[%s4] sm:$0x1]
    %v106 = vlaneseq
    %v107 = vshrl.u32 %v106, 7
    %v108 = vsub.s32 0, %v107
    %v109 = vrot.slane %v104, %v108
    %v115 = vunpack.c.l.b16 %v100
    %v116 = vunpack.c.l.b16 %v101
    %v117 = vunpack.c.l.b16 %v102
    %v118 = vunpack.c.l.b16 %v103
    %v119 = vpack.c.b16 %v116, %v115
    %v120 = vpack.c.b16 %v118, %v117
    %vm123 = vcmask 261120
    %v125 = vsel %vm123, %v99, 0
    %127 = vmatprep.subr.bf16.mxu0 0
    %128 = vmatpush1.bf16.msra.mxu0 0
    %129 = vmatprep.subr.bf16.mxu0 0
    %130 = vmatpush1.bf16.msra.mxu0 0
    %131 = vmatprep.subr.bf16.mxu0 0
    %132 = vmatpush1.bf16.msra.mxu0 0
    %133 = vmatprep.subr.bf16.mxu0 0
    %134 = vmatpush1.bf16.msra.mxu0 0
    %135 = vmatprep.subr.bf16.mxu0 0
    %136 = vmatpush1.bf16.msra.mxu0 0
    %137 = vmatprep.subr.bf16.mxu0 0
    %138 = vmatpush1.bf16.msra.mxu0 0
    %139 = vmatprep.subr.bf16.mxu0 0
    %140 = vmatpush1.bf16.msra.mxu0 %v120
    %141 = vmatprep.subr.bf16.mxu0 0
    %142 = vmatpush1.bf16.msra.mxu0 %v119
    %143 = vmatprep.subr.bf16.mxu0 0
    %144 = vmatpush2.bf16.msra.mxu0 0
    %145 = vmatprep.subr.bf16.mxu0 0
    %146 = vmatpush2.bf16.msra.mxu0 0
    %147 = vmatprep.subr.bf16.mxu0 0
    %148 = vmatpush2.bf16.msra.mxu0 0
    %149 = vmatprep.subr.bf16.mxu0 0
    %150 = vmatpush2.bf16.msra.mxu0 0
    %151 = vmatprep.subr.bf16.mxu0 0
    %152 = vmatpush2.bf16.msra.mxu0 0
    %153 = vmatprep.subr.bf16.mxu0 0
    %154 = vmatpush2.bf16.msra.mxu0 0
    %155 = vmatprep.subr.bf16.mxu0 0
    %156 = vmatpush2.bf16.msra.mxu0 0
    %157 = vmatprep.subr.bf16.mxu0 0
    %158 = vmatpush2.bf16.msra.mxu0 0
    %159 = vmatprep.mubr.bf16.mxu0 0
    %160 = vmatmul.mubr.bf16.gmra.mxu0 %v125
    %v161 = vpop.f32.mrf.mxu0
    %v162 = vadd.f32 %v109, %v161
    %v163 = vpop.f32.mrf.mxu0
    %v164 = vpop.f32.mrf.mxu0
    %v165 = vadd.f32 %v109, %v164
    %v166 = vpop.f32.mrf.mxu0
    %167 = vdwg.mxu0
    %v168 = vpack.c.bf16 %v165, %v162
    %170 = vrot.lane.b32.xlu0 %v168, 96
    %v171 = vpop.permute.xlu0 %170
    %vm172 = vcmask 64512
    %v174 = vsel %vm172, %v168, 0
    %v177 = vsel %vm172, %v171, 0
    %179 = vmatprep.subr.bf16.mxu0 0
    %180 = vmatpush1.bf16.xpose.msra.mxu0 0
    %181 = vmatprep.subr.bf16.mxu0 0
    %182 = vmatpush1.bf16.xpose.msra.mxu0 0
    %183 = vmatprep.subr.bf16.mxu0 0
    %184 = vmatpush1.bf16.xpose.msra.mxu0 0
    %185 = vmatprep.subr.bf16.mxu0 0
    %186 = vmatpush1.bf16.xpose.msra.mxu0 0
    %187 = vmatprep.subr.bf16.mxu0 0
    %188 = vmatpush1.bf16.xpose.msra.mxu0 0
    %189 = vmatprep.subr.bf16.mxu0 0
    %190 = vmatpush1.bf16.xpose.msra.mxu0 0
    %191 = vmatprep.subr.bf16.mxu0 0
    %192 = vmatpush1.bf16.xpose.msra.mxu0 0
    %193 = vmatprep.subr.bf16.mxu0 0
    %194 = vmatpush1.bf16.xpose.msra.mxu0 %v177
    %195 = vmatprep.subr.bf16.mxu0 0
    %196 = vmatpush2.bf16.xpose.msra.mxu0 0
    %197 = vmatprep.subr.bf16.mxu0 0
    %198 = vmatpush2.bf16.xpose.msra.mxu0 0
    %199 = vmatprep.subr.bf16.mxu0 0
    %200 = vmatpush2.bf16.xpose.msra.mxu0 0
    %201 = vmatprep.subr.bf16.mxu0 0
    %202 = vmatpush2.bf16.xpose.msra.mxu0 0
    %203 = vmatprep.subr.bf16.mxu0 0
    %204 = vmatpush2.bf16.xpose.msra.mxu0 0
    %205 = vmatprep.subr.bf16.mxu0 0
    %206 = vmatpush2.bf16.xpose.msra.mxu0 0
    %207 = vmatprep.subr.bf16.mxu0 0
    %208 = vmatpush2.bf16.xpose.msra.mxu0 0
    %209 = vmatprep.subr.bf16.mxu0 0
    %210 = vmatpush2.bf16.xpose.msra.mxu0 0
    %211 = vmatprep.mubr.bf16.mxu0 0
    %212 = vmatmul.mubr.bf16.gmra.mxu0 %v174
    %v213 = vpop.f32.mrf.mxu0
    %v214 = vadd.f32 %v97, %v213
    %v215 = vpop.f32.mrf.mxu0
    %v216 = vpop.f32.mrf.mxu0
    %v217 = vadd.f32 %v98, %v216
    %v218 = vpop.f32.mrf.mxu0
    %219 = vdwg.mxu0
    %vm220 = vcmask 130048
    %v221 = vsel %vm220, %v214, -inf
    %222 = vmax.xlane.f32.xlu0 %v221
    %v223 = vpop.xlane.xlu0 %222
    %v224 = vsel %vm220, %v217, -inf
    %225 = vmax.xlane.f32.xlu0 %v224
    %v226 = vpop.xlane.xlu0 %225
    %v227 = vsub.f32 %v214, %v223
    %v228 = vsub.f32 %v217, %v226
    %v229 = vmul.f32 %v227, 1.442695
    %v230 = vpow.pop %v229
    %v231 = vmul.f32 %v228, 1.442695
    %v232 = vpow.pop %v231
    %v233 = vsel %vm220, %v230, 0.0
    %234 = vadd.xlane.f32.xlu0 %v233
    %v235 = vpop.xlane.xlu0 %234
    %v236 = vsel %vm220, %v232, 0.0
    %237 = vadd.xlane.f32.xlu0 %v236
    %v238 = vpop.xlane.xlu0 %237
    %v239 = vrcp.pop %v235
    %v240 = vrcp.pop %v238
    %v241 = vmul.f32 %v230, %v239
    %v242 = vmul.f32 %v232, %v240
    %v243 = vpack.c.bf16 %v242, %v241
    %244 = vrot.lane.b32.xlu0 %v168, 64
    %v245 = vpop.permute.xlu0 %244
    %v248 = vsel %vm220, %v243, 0
    %250 = vmatprep.subr.bf16.mxu0 0
    %251 = vmatpush1.bf16.msra.mxu0 0
    %252 = vmatprep.subr.bf16.mxu0 0
    %253 = vmatpush1.bf16.msra.mxu0 0
    %254 = vmatprep.subr.bf16.mxu0 0
    %255 = vmatpush1.bf16.msra.mxu0 0
    %256 = vmatprep.subr.bf16.mxu0 0
    %257 = vmatpush1.bf16.msra.mxu0 0
    %258 = vmatprep.subr.bf16.mxu0 0
    %259 = vmatpush1.bf16.msra.mxu0 0
    %260 = vmatprep.subr.bf16.mxu0 0
    %261 = vmatpush1.bf16.msra.mxu0 0
    %262 = vmatprep.subr.bf16.mxu0 0
    %263 = vmatpush1.bf16.msra.mxu0 0
    %264 = vmatprep.subr.bf16.mxu0 0
    %265 = vmatpush1.bf16.msra.mxu0 %v245
    %266 = vmatprep.subr.bf16.mxu0 0
    %267 = vmatpush2.bf16.msra.mxu0 0
    %268 = vmatprep.subr.bf16.mxu0 0
    %269 = vmatpush2.bf16.msra.mxu0 0
    %270 = vmatprep.subr.bf16.mxu0 0
    %271 = vmatpush2.bf16.msra.mxu0 0
    %272 = vmatprep.subr.bf16.mxu0 0
    %273 = vmatpush2.bf16.msra.mxu0 0
    %274 = vmatprep.subr.bf16.mxu0 0
    %275 = vmatpush2.bf16.msra.mxu0 0
    %276 = vmatprep.subr.bf16.mxu0 0
    %277 = vmatpush2.bf16.msra.mxu0 0
    %278 = vmatprep.subr.bf16.mxu0 0
    %279 = vmatpush2.bf16.msra.mxu0 0
    %280 = vmatprep.subr.bf16.mxu0 0
    %281 = vmatpush2.bf16.msra.mxu0 0
    %282 = vmatprep.mubr.bf16.mxu0 0
    %283 = vmatmul.mubr.bf16.gmra.mxu0 %v248
    %v284 = vpop.f32.mrf.mxu0
    %v285 = vadd.f32 0.0, %v284
    %v286 = vpop.f32.mrf.mxu0
    %v287 = vpop.f32.mrf.mxu0
    %v288 = vadd.f32 0.0, %v287
    %v289 = vpop.f32.mrf.mxu0
    %290 = vdwg.mxu0
    %291 = vrot.lane.b32.xlu0 %v168, 120
    %v292 = vpop.permute.xlu0 %291
    %293 = vrot.lane.b32.xlu0 %v168, 88
    %v294 = vpop.permute.xlu0 %293
    %v296 = vsel %vm172, %v292, 0
    %v299 = vsel %vm172, %v294, 0
    %301 = vmatprep.subr.bf16.mxu0 0
    %302 = vmatpush1.bf16.xpose.msra.mxu0 0
    %303 = vmatprep.subr.bf16.mxu0 0
    %304 = vmatpush1.bf16.xpose.msra.mxu0 0
    %305 = vmatprep.subr.bf16.mxu0 0
    %306 = vmatpush1.bf16.xpose.msra.mxu0 0
    %307 = vmatprep.subr.bf16.mxu0 0
    %308 = vmatpush1.bf16.xpose.msra.mxu0 0
    %309 = vmatprep.subr.bf16.mxu0 0
    %310 = vmatpush1.bf16.xpose.msra.mxu0 0
    %311 = vmatprep.subr.bf16.mxu0 0
    %312 = vmatpush1.bf16.xpose.msra.mxu0 0
    %313 = vmatprep.subr.bf16.mxu0 0
    %314 = vmatpush1.bf16.xpose.msra.mxu0 0
    %315 = vmatprep.subr.bf16.mxu0 0
    %316 = vmatpush1.bf16.xpose.msra.mxu0 %v299
    %317 = vmatprep.subr.bf16.mxu0 0
    %318 = vmatpush2.bf16.xpose.msra.mxu0 0
    %319 = vmatprep.subr.bf16.mxu0 0
    %320 = vmatpush2.bf16.xpose.msra.mxu0 0
    %321 = vmatprep.subr.bf16.mxu0 0
    %322 = vmatpush2.bf16.xpose.msra.mxu0 0
    %323 = vmatprep.subr.bf16.mxu0 0
    %324 = vmatpush2.bf16.xpose.msra.mxu0 0
    %325 = vmatprep.subr.bf16.mxu0 0
    %326 = vmatpush2.bf16.xpose.msra.mxu0 0
    %327 = vmatprep.subr.bf16.mxu0 0
    %328 = vmatpush2.bf16.xpose.msra.mxu0 0
    %329 = vmatprep.subr.bf16.mxu0 0
    %330 = vmatpush2.bf16.xpose.msra.mxu0 0
    %331 = vmatprep.subr.bf16.mxu0 0
    %332 = vmatpush2.bf16.xpose.msra.mxu0 0
    %333 = vmatprep.mubr.bf16.mxu0 0
    %334 = vmatmul.mubr.bf16.gmra.mxu0 %v296
    %v335 = vpop.f32.mrf.mxu0
    %v336 = vadd.f32 %v97, %v335
    %v337 = vpop.f32.mrf.mxu0
    %v338 = vpop.f32.mrf.mxu0
    %v339 = vadd.f32 %v98, %v338
    %v340 = vpop.f32.mrf.mxu0
    %341 = vdwg.mxu0
    %v342 = vsel %vm220, %v336, -inf
    %343 = vmax.xlane.f32.xlu0 %v342
    %v344 = vpop.xlane.xlu0 %343
    %v345 = vsel %vm220, %v339, -inf
    %346 = vmax.xlane.f32.xlu0 %v345
    %v347 = vpop.xlane.xlu0 %346
    %v348 = vsub.f32 %v336, %v344
    %v349 = vsub.f32 %v339, %v347
    %v350 = vmul.f32 %v348, 1.442695
    %v351 = vpow.pop %v350
    %v352 = vmul.f32 %v349, 1.442695
    %v353 = vpow.pop %v352
    %v354 = vsel %vm220, %v351, 0.0
    %355 = vadd.xlane.f32.xlu0 %v354
    %v356 = vpop.xlane.xlu0 %355
    %v357 = vsel %vm220, %v353, 0.0
    %358 = vadd.xlane.f32.xlu0 %v357
    %v359 = vpop.xlane.xlu0 %358
    %v360 = vrcp.pop %v356
    %v361 = vrcp.pop %v359
    %v362 = vmul.f32 %v351, %v360
    %v363 = vmul.f32 %v353, %v361
    %v364 = vpack.c.bf16 %v363, %v362
    %365 = vrot.lane.b32.xlu0 %v168, 56
    %v366 = vpop.permute.xlu0 %365
    %v369 = vsel %vm220, %v364, 0
    %371 = vmatprep.subr.bf16.mxu0 0
    %372 = vmatpush1.bf16.msra.mxu0 0
    %373 = vmatprep.subr.bf16.mxu0 0
    %374 = vmatpush1.bf16.msra.mxu0 0
    %375 = vmatprep.subr.bf16.mxu0 0
    %376 = vmatpush1.bf16.msra.mxu0 0
    %377 = vmatprep.subr.bf16.mxu0 0
    %378 = vmatpush1.bf16.msra.mxu0 0
    %379 = vmatprep.subr.bf16.mxu0 0
    %380 = vmatpush1.bf16.msra.mxu0 0
    %381 = vmatprep.subr.bf16.mxu0 0
    %382 = vmatpush1.bf16.msra.mxu0 0
    %383 = vmatprep.subr.bf16.mxu0 0
    %384 = vmatpush1.bf16.msra.mxu0 0
    %385 = vmatprep.subr.bf16.mxu0 0
    %386 = vmatpush1.bf16.msra.mxu0 %v366
    %387 = vmatprep.subr.bf16.mxu0 0
    %388 = vmatpush2.bf16.msra.mxu0 0
    %389 = vmatprep.subr.bf16.mxu0 0
    %390 = vmatpush2.bf16.msra.mxu0 0
    %391 = vmatprep.subr.bf16.mxu0 0
    %392 = vmatpush2.bf16.msra.mxu0 0
    %393 = vmatprep.subr.bf16.mxu0 0
    %394 = vmatpush2.bf16.msra.mxu0 0
    %395 = vmatprep.subr.bf16.mxu0 0
    %396 = vmatpush2.bf16.msra.mxu0 0
    %397 = vmatprep.subr.bf16.mxu0 0
    %398 = vmatpush2.bf16.msra.mxu0 0
    %399 = vmatprep.subr.bf16.mxu0 0
    %400 = vmatpush2.bf16.msra.mxu0 0
    %401 = vmatprep.subr.bf16.mxu0 0
    %402 = vmatpush2.bf16.msra.mxu0 0
    %403 = vmatprep.mubr.bf16.mxu0 0
    %404 = vmatmul.mubr.bf16.gmra.mxu0 %v369
    %v405 = vpop.f32.mrf.mxu0
    %v406 = vadd.f32 0.0, %v405
    %v407 = vpop.f32.mrf.mxu0
    %v408 = vpop.f32.mrf.mxu0
    %v409 = vadd.f32 0.0, %v408
    %v410 = vpop.f32.mrf.mxu0
    %411 = vdwg.mxu0
    %412 = vrot.lane.b32.xlu0 %v168, 112
    %v413 = vpop.permute.xlu0 %412
    %414 = vrot.lane.b32.xlu0 %v168, 80
    %v415 = vpop.permute.xlu0 %414
    %v417 = vsel %vm172, %v413, 0
    %v420 = vsel %vm172, %v415, 0
    %422 = vmatprep.subr.bf16.mxu0 0
    %423 = vmatpush1.bf16.xpose.msra.mxu0 0
    %424 = vmatprep.subr.bf16.mxu0 0
    %425 = vmatpush1.bf16.xpose.msra.mxu0 0
    %426 = vmatprep.subr.bf16.mxu0 0
    %427 = vmatpush1.bf16.xpose.msra.mxu0 0
    %428 = vmatprep.subr.bf16.mxu0 0
    %429 = vmatpush1.bf16.xpose.msra.mxu0 0
    %430 = vmatprep.subr.bf16.mxu0 0
    %431 = vmatpush1.bf16.xpose.msra.mxu0 0
    %432 = vmatprep.subr.bf16.mxu0 0
    %433 = vmatpush1.bf16.xpose.msra.mxu0 0
    %434 = vmatprep.subr.bf16.mxu0 0
    %435 = vmatpush1.bf16.xpose.msra.mxu0 0
    %436 = vmatprep.subr.bf16.mxu0 0
    %437 = vmatpush1.bf16.xpose.msra.mxu0 %v420
    %438 = vmatprep.subr.bf16.mxu0 0
    %439 = vmatpush2.bf16.xpose.msra.mxu0 0
    %440 = vmatprep.subr.bf16.mxu0 0
    %441 = vmatpush2.bf16.xpose.msra.mxu0 0
    %442 = vmatprep.subr.bf16.mxu0 0
    %443 = vmatpush2.bf16.xpose.msra.mxu0 0
    %444 = vmatprep.subr.bf16.mxu0 0
    %445 = vmatpush2.bf16.xpose.msra.mxu0 0
    %446 = vmatprep.subr.bf16.mxu0 0
    %447 = vmatpush2.bf16.xpose.msra.mxu0 0
    %448 = vmatprep.subr.bf16.mxu0 0
    %449 = vmatpush2.bf16.xpose.msra.mxu0 0
    %450 = vmatprep.subr.bf16.mxu0 0
    %451 = vmatpush2.bf16.xpose.msra.mxu0 0
    %452 = vmatprep.subr.bf16.mxu0 0
    %453 = vmatpush2.bf16.xpose.msra.mxu0 0
    %454 = vmatprep.mubr.bf16.mxu0 0
    %455 = vmatmul.mubr.bf16.gmra.mxu0 %v417
    %v456 = vpop.f32.mrf.mxu0
    %v457 = vadd.f32 %v97, %v456
    %v458 = vpop.f32.mrf.mxu0
    %v459 = vpop.f32.mrf.mxu0
    %v460 = vadd.f32 %v98, %v459
    %v461 = vpop.f32.mrf.mxu0
    %462 = vdwg.mxu0
    %v463 = vsel %vm220, %v457, -inf
    %464 = vmax.xlane.f32.xlu0 %v463
    %v465 = vpop.xlane.xlu0 %464
    %v466 = vsel %vm220, %v460, -inf
    %467 = vmax.xlane.f32.xlu0 %v466
    %v468 = vpop.xlane.xlu0 %467
    %v469 = vsub.f32 %v457, %v465
    %v470 = vsub.f32 %v460, %v468
    %v471 = vmul.f32 %v469, 1.442695
    %v472 = vpow.pop %v471
    %v473 = vmul.f32 %v470, 1.442695
    %v474 = vpow.pop %v473
    %v475 = vsel %vm220, %v472, 0.0
    %476 = vadd.xlane.f32.xlu0 %v475
    %v477 = vpop.xlane.xlu0 %476
    %v478 = vsel %vm220, %v474, 0.0
    %479 = vadd.xlane.f32.xlu0 %v478
    %v480 = vpop.xlane.xlu0 %479
    %v481 = vrcp.pop %v477
    %v482 = vrcp.pop %v480
    %v483 = vmul.f32 %v472, %v481
    %v484 = vmul.f32 %v474, %v482
    %v485 = vpack.c.bf16 %v484, %v483
    %486 = vrot.lane.b32.xlu0 %v168, 48
    %v487 = vpop.permute.xlu0 %486
    %v490 = vsel %vm220, %v485, 0
    %492 = vmatprep.subr.bf16.mxu0 0
    %493 = vmatpush1.bf16.msra.mxu0 0
    %494 = vmatprep.subr.bf16.mxu0 0
    %495 = vmatpush1.bf16.msra.mxu0 0
    %496 = vmatprep.subr.bf16.mxu0 0
    %497 = vmatpush1.bf16.msra.mxu0 0
    %498 = vmatprep.subr.bf16.mxu0 0
    %499 = vmatpush1.bf16.msra.mxu0 0
    %500 = vmatprep.subr.bf16.mxu0 0
    %501 = vmatpush1.bf16.msra.mxu0 0
    %502 = vmatprep.subr.bf16.mxu0 0
    %503 = vmatpush1.bf16.msra.mxu0 0
    %504 = vmatprep.subr.bf16.mxu0 0
    %505 = vmatpush1.bf16.msra.mxu0 0
    %506 = vmatprep.subr.bf16.mxu0 0
    %507 = vmatpush1.bf16.msra.mxu0 %v487
    %508 = vmatprep.subr.bf16.mxu0 0
    %509 = vmatpush2.bf16.msra.mxu0 0
    %510 = vmatprep.subr.bf16.mxu0 0
    %511 = vmatpush2.bf16.msra.mxu0 0
    %512 = vmatprep.subr.bf16.mxu0 0
    %513 = vmatpush2.bf16.msra.mxu0 0
    %514 = vmatprep.subr.bf16.mxu0 0
    %515 = vmatpush2.bf16.msra.mxu0 0
    %516 = vmatprep.subr.bf16.mxu0 0
    %517 = vmatpush2.bf16.msra.mxu0 0
    %518 = vmatprep.subr.bf16.mxu0 0
    %519 = vmatpush2.bf16.msra.mxu0 0
    %520 = vmatprep.subr.bf16.mxu0 0
    %521 = vmatpush2.bf16.msra.mxu0 0
    %522 = vmatprep.subr.bf16.mxu0 0
    %523 = vmatpush2.bf16.msra.mxu0 0
    %524 = vmatprep.mubr.bf16.mxu0 0
    %525 = vmatmul.mubr.bf16.gmra.mxu0 %v490
    %v526 = vpop.f32.mrf.mxu0
    %v527 = vadd.f32 0.0, %v526
    %v528 = vpop.f32.mrf.mxu0
    %v529 = vpop.f32.mrf.mxu0
    %v530 = vadd.f32 0.0, %v529
    %v531 = vpop.f32.mrf.mxu0
    %532 = vdwg.mxu0
    %533 = vrot.lane.b32.xlu0 %v168, 104
    %v534 = vpop.permute.xlu0 %533
    %535 = vrot.lane.b32.xlu0 %v168, 72
    %v536 = vpop.permute.xlu0 %535
    %v538 = vsel %vm172, %v534, 0
    %v541 = vsel %vm172, %v536, 0
    %543 = vmatprep.subr.bf16.mxu0 0
    %544 = vmatpush1.bf16.xpose.msra.mxu0 0
    %545 = vmatprep.subr.bf16.mxu0 0
    %546 = vmatpush1.bf16.xpose.msra.mxu0 0
    %547 = vmatprep.subr.bf16.mxu0 0
    %548 = vmatpush1.bf16.xpose.msra.mxu0 0
    %549 = vmatprep.subr.bf16.mxu0 0
    %550 = vmatpush1.bf16.xpose.msra.mxu0 0
    %551 = vmatprep.subr.bf16.mxu0 0
    %552 = vmatpush1.bf16.xpose.msra.mxu0 0
    %553 = vmatprep.subr.bf16.mxu0 0
    %554 = vmatpush1.bf16.xpose.msra.mxu0 0
    %555 = vmatprep.subr.bf16.mxu0 0
    %556 = vmatpush1.bf16.xpose.msra.mxu0 0
    %557 = vmatprep.subr.bf16.mxu0 0
    %558 = vmatpush1.bf16.xpose.msra.mxu0 %v541
    %559 = vmatprep.subr.bf16.mxu0 0
    %560 = vmatpush2.bf16.xpose.msra.mxu0 0
    %561 = vmatprep.subr.bf16.mxu0 0
    %562 = vmatpush2.bf16.xpose.msra.mxu0 0
    %563 = vmatprep.subr.bf16.mxu0 0
    %564 = vmatpush2.bf16.xpose.msra.mxu0 0
    %565 = vmatprep.subr.bf16.mxu0 0
    %566 = vmatpush2.bf16.xpose.msra.mxu0 0
    %567 = vmatprep.subr.bf16.mxu0 0
    %568 = vmatpush2.bf16.xpose.msra.mxu0 0
    %569 = vmatprep.subr.bf16.mxu0 0
    %570 = vmatpush2.bf16.xpose.msra.mxu0 0
    %571 = vmatprep.subr.bf16.mxu0 0
    %572 = vmatpush2.bf16.xpose.msra.mxu0 0
    %573 = vmatprep.subr.bf16.mxu0 0
    %574 = vmatpush2.bf16.xpose.msra.mxu0 0
    %575 = vmatprep.mubr.bf16.mxu0 0
    %576 = vmatmul.mubr.bf16.gmra.mxu0 %v538
    %v577 = vpop.f32.mrf.mxu0
    %v578 = vadd.f32 %v97, %v577
    %v579 = vpop.f32.mrf.mxu0
    %v580 = vpop.f32.mrf.mxu0
    %v581 = vadd.f32 %v98, %v580
    %v582 = vpop.f32.mrf.mxu0
    %583 = vdwg.mxu0
    %v584 = vsel %vm220, %v578, -inf
    %585 = vmax.xlane.f32.xlu0 %v584
    %v586 = vpop.xlane.xlu0 %585
    %v587 = vsel %vm220, %v581, -inf
    %588 = vmax.xlane.f32.xlu0 %v587
    %v589 = vpop.xlane.xlu0 %588
    %v590 = vsub.f32 %v578, %v586
    %v591 = vsub.f32 %v581, %v589
    %v592 = vmul.f32 %v590, 1.442695
    %v593 = vpow.pop %v592
    %v594 = vmul.f32 %v591, 1.442695
    %v595 = vpow.pop %v594
    %v596 = vsel %vm220, %v593, 0.0
    %597 = vadd.xlane.f32.xlu0 %v596
    %v598 = vpop.xlane.xlu0 %597
    %v599 = vsel %vm220, %v595, 0.0
    %600 = vadd.xlane.f32.xlu0 %v599
    %v601 = vpop.xlane.xlu0 %600
    %v602 = vrcp.pop %v598
    %v603 = vrcp.pop %v601
    %v604 = vmul.f32 %v593, %v602
    %v605 = vmul.f32 %v595, %v603
    %v606 = vpack.c.bf16 %v605, %v604
    %607 = vrot.lane.b32.xlu0 %v168, 40
    %v608 = vpop.permute.xlu0 %607
    %v611 = vsel %vm220, %v606, 0
    %613 = vmatprep.subr.bf16.mxu0 0
    %614 = vmatpush1.bf16.msra.mxu0 0
    %615 = vmatprep.subr.bf16.mxu0 0
    %616 = vmatpush1.bf16.msra.mxu0 0
    %617 = vmatprep.subr.bf16.mxu0 0
    %618 = vmatpush1.bf16.msra.mxu0 0
    %619 = vmatprep.subr.bf16.mxu0 0
    %620 = vmatpush1.bf16.msra.mxu0 0
    %621 = vmatprep.subr.bf16.mxu0 0
    %622 = vmatpush1.bf16.msra.mxu0 0
    %623 = vmatprep.subr.bf16.mxu0 0
    %624 = vmatpush1.bf16.msra.mxu0 0
    %625 = vmatprep.subr.bf16.mxu0 0
    %626 = vmatpush1.bf16.msra.mxu0 0
    %627 = vmatprep.subr.bf16.mxu0 0
    %628 = vmatpush1.bf16.msra.mxu0 %v608
    %629 = vmatprep.subr.bf16.mxu0 0
    %630 = vmatpush2.bf16.msra.mxu0 0
    %631 = vmatprep.subr.bf16.mxu0 0
    %632 = vmatpush2.bf16.msra.mxu0 0
    %633 = vmatprep.subr.bf16.mxu0 0
    %634 = vmatpush2.bf16.msra.mxu0 0
    %635 = vmatprep.subr.bf16.mxu0 0
    %636 = vmatpush2.bf16.msra.mxu0 0
    %637 = vmatprep.subr.bf16.mxu0 0
    %638 = vmatpush2.bf16.msra.mxu0 0
    %639 = vmatprep.subr.bf16.mxu0 0
    %640 = vmatpush2.bf16.msra.mxu0 0
    %641 = vmatprep.subr.bf16.mxu0 0
    %642 = vmatpush2.bf16.msra.mxu0 0
    %643 = vmatprep.subr.bf16.mxu0 0
    %644 = vmatpush2.bf16.msra.mxu0 0
    %645 = vmatprep.mubr.bf16.mxu0 0
    %646 = vmatmul.mubr.bf16.gmra.mxu0 %v611
    %v647 = vpop.f32.mrf.mxu0
    %v648 = vadd.f32 0.0, %v647
    %v649 = vpop.f32.mrf.mxu0
    %v650 = vpop.f32.mrf.mxu0
    %v651 = vadd.f32 0.0, %v650
    %v652 = vpop.f32.mrf.mxu0
    %653 = vdwg.mxu0
    %656 = vrot.lane.b32.xlu0 %v406, 8
    %v657 = vpop.permute.xlu0 %656
    %658 = vrot.lane.b32.xlu0 %v409, 8
    %v659 = vpop.permute.xlu0 %658
    %664 = vrot.lane.b32.xlu0 %v527, 16
    %v665 = vpop.permute.xlu0 %664
    %666 = vrot.lane.b32.xlu0 %v530, 16
    %v667 = vpop.permute.xlu0 %666
    %672 = vrot.lane.b32.xlu0 %v648, 24
    %v673 = vpop.permute.xlu0 %672
    %674 = vrot.lane.b32.xlu0 %v651, 24
    %v675 = vpop.permute.xlu0 %674
    %v678 = vsel %vm172, %v285, %v657
    %v679 = vsel %vm172, %v288, %v659
    %v680 = vsel %vm220, %v678, %v665
    %v681 = vsel %vm220, %v679, %v667
    %vm682 = vcmask 195584
    %v683 = vsel %vm682, %v680, %v673
    %v684 = vsel %vm682, %v681, %v675
    %v685 = vpack.c.bf16 %v684, %v683
    %v686 = vld [vmem:[#allocation6] sm:$0xf]
    %v687 = vld [vmem:[#allocation6 + $0x4] sm:$0xf]
    %v688 = vld [vmem:[#allocation6 + $0x8] sm:$0xf]
    %v689 = vld [vmem:[#allocation6 + $0xc] sm:$0xf]
    %v690 = vld [vmem:[%s6] sm:$0x1]
    %v692 = vlaneseq
    %v693 = vshrl.u32 %v692, 7
    %v694 = vsub.s32 0, %v693
    %v695 = vrot.slane %v690, %v694
    %v701 = vunpack.c.l.b16 %v686
    %v702 = vunpack.c.l.b16 %v687
    %v703 = vunpack.c.l.b16 %v688
    %v704 = vunpack.c.l.b16 %v689
    %v705 = vpack.c.b16 %v702, %v701
    %v706 = vpack.c.b16 %v704, %v703
    %v710 = vsel %vm123, %v685, 0
    %712 = vmatprep.subr.bf16.mxu0 0
    %713 = vmatpush1.bf16.msra.mxu0 0
    %714 = vmatprep.subr.bf16.mxu0 0
    %715 = vmatpush1.bf16.msra.mxu0 0
    %716 = vmatprep.subr.bf16.mxu0 0
    %717 = vmatpush1.bf16.msra.mxu0 0
    %718 = vmatprep.subr.bf16.mxu0 0
    %719 = vmatpush1.bf16.msra.mxu0 0
    %720 = vmatprep.subr.bf16.mxu0 0
    %721 = vmatpush1.bf16.msra.mxu0 0
    %722 = vmatprep.subr.bf16.mxu0 0
    %723 = vmatpush1.bf16.msra.mxu0 0
    %724 = vmatprep.subr.bf16.mxu0 0
    %725 = vmatpush1.bf16.msra.mxu0 %v706
    %726 = vmatprep.subr.bf16.mxu0 0
    %727 = vmatpush1.bf16.msra.mxu0 %v705
    %728 = vmatprep.subr.bf16.mxu0 0
    %729 = vmatpush2.bf16.msra.mxu0 0
    %730 = vmatprep.subr.bf16.mxu0 0
    %731 = vmatpush2.bf16.msra.mxu0 0
    %732 = vmatprep.subr.bf16.mxu0 0
    %733 = vmatpush2.bf16.msra.mxu0 0
    %734 = vmatprep.subr.bf16.mxu0 0
    %735 = vmatpush2.bf16.msra.mxu0 0
    %736 = vmatprep.subr.bf16.mxu0 0
    %737 = vmatpush2.bf16.msra.mxu0 0
    %738 = vmatprep.subr.bf16.mxu0 0
    %739 = vmatpush2.bf16.msra.mxu0 0
    %740 = vmatprep.subr.bf16.mxu0 0
    %741 = vmatpush2.bf16.msra.mxu0 0
    %742 = vmatprep.subr.bf16.mxu0 0
    %743 = vmatpush2.bf16.msra.mxu0 0
    %744 = vmatprep.mubr.bf16.mxu0 0
    %745 = vmatmul.mubr.bf16.gmra.mxu0 %v710
    %v746 = vpop.f32.mrf.mxu0
    %v747 = vadd.f32 %v695, %v746
    %v748 = vpop.f32.mrf.mxu0
    %v749 = vpop.f32.mrf.mxu0
    %v750 = vadd.f32 %v695, %v749
    %v751 = vpop.f32.mrf.mxu0
    %752 = vdwg.mxu0
    %v753 = vadd.f32 %v747, %v86
    %v754 = vadd.f32 %v750, %v87
    %v755 = vsel %vm123, %v753, 0.0
    %756 = vadd.xlane.f32.xlu0 %v755
    %v757 = vpop.xlane.xlu0 %756
    %v758 = vsel %vm123, %v754, 0.0
    %759 = vadd.xlane.f32.xlu0 %v758
    %v760 = vpop.xlane.xlu0 %759
    %v761 = vrcp.pop 32.0
    %v762 = vmul.f32 %v757, %v761
    %v763 = vmul.f32 %v760, %v761
    %v764 = vsub.f32 %v753, %v762
    %v765 = vsub.f32 %v754, %v763
    %v766 = vmul.f32 %v764, %v764
    %v767 = vmul.f32 %v765, %v765
    %v768 = vsel %vm123, %v766, 0.0
    %769 = vadd.xlane.f32.xlu0 %v768
    %v770 = vpop.xlane.xlu0 %769
    %v771 = vsel %vm123, %v767, 0.0
    %772 = vadd.xlane.f32.xlu0 %v771
    %v773 = vpop.xlane.xlu0 %772
    %v774 = vmul.f32 %v770, %v761
    %v775 = vmul.f32 %v773, %v761
    %v776 = vadd.f32 %v774, 1e-12
    %v777 = vadd.f32 %v775, 1e-12
    %v778 = vrsqrt.pop %v776
    %v779 = vrsqrt.pop %v777
    %v780 = vmul.f32 %v764, %v778
    %v781 = vmul.f32 %v765, %v779
    %v782 = vld [vmem:[%s7] sm:$0x1]
    %v784 = vlaneseq
    %v785 = vshrl.u32 %v784, 7
    %v786 = vsub.s32 0, %v785
    %v787 = vrot.slane %v782, %v786
    %v789 = vmul.f32 %v787, %v780
    %v790 = vmul.f32 %v787, %v781
    %v791 = vld [vmem:[#allocation7] sm:$0x1]
    %v793 = vlaneseq
    %v794 = vshrl.u32 %v793, 7
    %v795 = vsub.s32 0, %v794
    %v796 = vrot.slane %v791, %v795
    %v798 = vadd.f32 %v789, %v796
    %v799 = vadd.f32 %v790, %v796
    %v800 = vsel %vm123, %v798, 0.0
    %v801 = vsel %vm123, %v799, 0.0
    %802 = vst [vmem:[%s9] sm:$0xff] %v800
    %803 = vst [vmem:[%s9 + $0x8] sm:$0xff] %v801
    // Predicated region
    $region54: #{bert_attention.1} parent=1 // pred_check
      _
    $region55: #{bert_attention.1} parent=1 // pred_check_branch
      %805 = sbr.rel (0) target = $region57
    $region56: #{bert_attention.1} parent=1 // pred_region
      _
    $region57: #{bert_attention.1} parent=1 // pred_fallthru
      _
    // Predicated region
    $region58: #{bert_attention.1} parent=1 // pred_check
      _
    $region59: #{bert_attention.1} parent=1 // pred_check_branch
      %807 = sbr.rel (0) target = $region61
    $region60: #{bert_attention.1} parent=1 // pred_region
      _
    $region61: #{bert_attention.1} parent=1 // pred_fallthru
      _
    %808 = vsyncpa [#allocation3], 1
    %809 = vsyncpa [#allocation5], 1
    %810 = vsyncpa [#allocation8], 1

</llo_original>
